<compile_context>
chip_gen: v5e
topology: v5e:2x2
jax: 0.10.0
libtpu: 0.0.40
codegen_flags: <defaults>
</compile_context>

<pallas_src>
import functools

import jax
import jax.numpy as jnp
import numpy as np
from jax import lax
from jax.experimental import pallas as pl
from jax.experimental.pallas import tpu as pltpu


def _round_up(x, m):
    return (x + m - 1) // m * m


def _vmem_cap_bytes():
    try:
        info = pltpu.get_tpu_info()
        cap = getattr(info, "vmem_capacity_bytes", None)
        if cap:
            return int(cap)
    except Exception:
        pass
    return 128 << 20  # v5e/v6e physical VMEM; conservative fallback


def _unet_down_kernel(xs_ref, w_ref, mask_ref, out_ref, xcat_ref, *,
                      shifts, c4, t128, p_valid, eps, negative_slope,
                      normalize):
    """One (batch, Cout-block) grid step.

    xs_ref   : (C4, Lpad)    space-to-depth input, compute dtype (bf16)
    w_ref    : (TC, 4*C4)    fused per-shift conv weights, compute dtype
    mask_ref : (1, T128)     1.0 at valid flat output positions, f32
    out_ref  : (TC, T128)    compute dtype, flat output index t = oh*Wq + ow
    xcat_ref : (4*C4, T128)  VMEM scratch: four lane-shifted copies of xs
    """
    # Build the fused activation operand once per grid step (lane realignment
    # of the 3 unaligned shifts is paid here, once, instead of per matmul).
    for m, sh in enumerate(shifts):
        xcat_ref[m * c4:(m + 1) * c4, :] = xs_ref[:, sh:sh + t128]

    # --- conv as ONE MXU matmul, accumulated in f32 ---------------------------
    y = jnp.dot(w_ref[...], xcat_ref[...], preferred_element_type=jnp.float32)

    # --- InstanceNorm2d (affine=False, biased var, eps) over valid positions --
    if normalize:
        mask = mask_ref[...]                              # (1, T128) f32
        ym = y * mask
        s1 = jnp.sum(ym, axis=1, keepdims=True)           # (TC, 1)
        s2 = jnp.sum(ym * y, axis=1, keepdims=True)       # sum(y^2 * mask)
        inv_p = 1.0 / p_valid
        mean = s1 * inv_p
        var = jnp.maximum(s2 * inv_p - mean * mean, 0.0)   # clamp cancellation
        inv = lax.rsqrt(var + eps)                         # EUP
        y = y * inv - mean * inv                           # fused scale/shift

    # --- LeakyReLU(0.2) as a single max ---------------------------------------
    y = jnp.maximum(y, negative_slope * y)
    out_ref[...] = y.astype(out_ref.dtype)


def unet_down(x_nchw, w_oihw, *, normalize=True, eps=1e-5, negative_slope=0.2,
              compute_dtype=jnp.bfloat16):
    """UNetDown forward.  x_nchw: (N, Cin, H, W), w_oihw: (Cout, Cin, 4, 4).

    Returns (N, Cout, H//2, W//2) in compute_dtype (bf16 by default)."""
    N, Cin, H, W = x_nchw.shape
    Cout, Cin_w, KH, KW = w_oihw.shape
    assert (KH, KW) == (4, 4) and Cin_w == Cin
    assert H % 2 == 0 and W % 2 == 0, "stride-2 k=4 p=1 conv expects even H, W"

    OH, OW = H // 2, W // 2
    Hq, Wq = OH + 1, OW + 1          # per-phase spatial extent after s2d
    C4 = 4 * Cin                     # phase-major channel count
    K = 4 * C4                       # fused contraction dim = 16 * Cin
    T_pad = OH * Wq                  # flat output length (Wq-wide rows)
    T128 = _round_up(T_pad, 128)     # lane-dense output length
    L = Hq * Wq                      # flat per-phase spatial length
    Lpad = _round_up(T128 + Wq + 1, 128)     # lane-padded input length

    # ---- input: cast to bf16 FIRST, then zero-pad + 2x2 space-to-depth -------
    xc = x_nchw.astype(compute_dtype)
    xp = jnp.pad(xc, ((0, 0), (0, 0), (1, 1), (1, 1)))           # (N,Cin,2Hq,2Wq)
    xs6 = xp.reshape(N, Cin, Hq, 2, Wq, 2)                       # (n,c,q,r,p,s)
    xs = jnp.transpose(xs6, (0, 3, 5, 1, 2, 4)).reshape(N, C4, L)
    xs = jnp.pad(xs, ((0, 0), (0, 0), (0, Lpad - L)))

    # ---- weights: (Cout,Cin,4,4) -> fused (Cout, 16*Cin) ----------------------
    # kh = 2a + r, kw = 2b + s ; shift m = a*2 + b ; contraction k = m*C4 + cp
    # with cp = (r*2 + s)*Cin + c (matches the scratch row layout above).
    w6 = w_oihw.reshape(Cout, Cin, 2, 2, 2, 2)                   # (co,c,a,r,b,s)
    wf = jnp.transpose(w6, (0, 2, 4, 3, 5, 1)).reshape(Cout, K)
    wf = wf.astype(compute_dtype)

    # ---- validity mask over flat output index t = oh*Wq + ow ------------------
    t = np.arange(T128)
    mask = jnp.asarray(((t < T_pad) & (t % Wq < OW)).astype(np.float32)
                       ).reshape(1, T128)

    shifts = tuple(a * Wq + b for a in (0, 1) for b in (0, 1))   # m = a*2 + b

    # ---- Cout tiling: second parallel grid axis (v7x 2-TC, smaller slabs) -----
    TC = 128 if Cout % 128 == 0 else Cout
    n_co = Cout // TC

    kernel = functools.partial(
        _unet_down_kernel, shifts=shifts, c4=C4, t128=T128,
        p_valid=float(OH * OW), eps=eps, negative_slope=negative_slope,
        normalize=normalize)

    # ---- cost / VMEM hints -----------------------------------------------------
    isz = jnp.dtype(compute_dtype).itemsize
    flops = 2 * N * Cout * K * T128 + 10 * N * Cout * T128
    bytes_accessed = (xs.size * isz + wf.size * isz + mask.size * 4
                      + N * Cout * T128 * isz)
    vmem_need = (2 * C4 * Lpad * isz          # xs block (double-buffered)
                 + 2 * TC * K * isz           # weight block
                 + 2 * T128 * 4               # mask
                 + 2 * TC * T128 * isz        # output block
                 + K * T128 * isz             # xcat scratch
                 + 3 * TC * T128 * 4)         # f32 y/ym temporaries
    vmem_limit = int(min(int(0.75 * _vmem_cap_bytes()),
                         max(16 << 20, 4 * vmem_need)))

    out = pl.pallas_call(
        kernel,
        out_shape=jax.ShapeDtypeStruct((N, Cout, T128), compute_dtype),
        grid_spec=pltpu.PrefetchScalarGridSpec(
            num_scalar_prefetch=0,
            grid=(N, n_co),
            in_specs=[
                pl.BlockSpec((pl.Squeezed(), C4, Lpad), lambda n, co: (n, 0, 0)),
                pl.BlockSpec((TC, K), lambda n, co: (co, 0)),
                pl.BlockSpec((1, T128), lambda n, co: (0, 0)),
            ],
            out_specs=pl.BlockSpec((pl.Squeezed(), TC, T128),
                                   lambda n, co: (n, co, 0)),
            scratch_shapes=[pltpu.VMEM((K, T128), compute_dtype)],
        ),
        compiler_params=pltpu.CompilerParams(
            dimension_semantics=("parallel", "parallel"),
            vmem_limit_bytes=vmem_limit),
        cost_estimate=pl.CostEstimate(flops=int(flops),
                                      transcendentals=int(N * Cout),
                                      bytes_accessed=int(bytes_accessed)),
    )(xs, wf, mask)

    # (N, Cout, T128) is already NCHW-ordered; drop the lane pad and the
    # Wq-OW per-row pad columns (pad columns hold finite garbage -- never
    # consume the raw kernel output without this slice).
    return out[:, :, :T_pad].reshape(N, Cout, OH, Wq)[:, :, :, :OW]


def _reference(x_nchw, w_oihw, *, normalize=True, eps=1e-5, negative_slope=0.2,
               compute_dtype=jnp.bfloat16):
    """Pure-JAX reference (lax.conv) with matching bf16 operand rounding."""
    y = lax.conv_general_dilated(
        x_nchw.astype(compute_dtype), w_oihw.astype(compute_dtype),
        window_strides=(2, 2), padding=((1, 1), (1, 1)),
        dimension_numbers=("NCHW", "OIHW", "NCHW"),
        preferred_element_type=jnp.float32)
    if normalize:
        mean = jnp.mean(y, axis=(2, 3), keepdims=True)
        var = jnp.mean((y - mean) ** 2, axis=(2, 3), keepdims=True)
        y = (y - mean) * lax.rsqrt(var + eps)
    return jnp.where(y >= 0, y, negative_slope * y)


if __name__ == "__main__":
    # Small shapes consistent with the generator's encoder (down1 -> down3).
    N, Cin, H, W = 2, 4, 16, 16
    feats = 8

    key = jax.random.PRNGKey(0)
    kx, k1, k2, k3 = jax.random.split(key, 4)
    x = jax.random.normal(kx, (N, Cin, H, W), dtype=jnp.float32)
    w1 = jax.random.normal(k1, (feats, Cin, 4, 4), jnp.float32) / np.sqrt(Cin * 16)
    w2 = jax.random.normal(k2, (2 * feats, feats, 4, 4), jnp.float32) / np.sqrt(feats * 16)
    w3 = jax.random.normal(k3, (4 * feats, 2 * feats, 4, 4), jnp.float32) / np.sqrt(2 * feats * 16)

    down = jax.jit(unet_down, static_argnames=("normalize",))

    # Encoder prefix of UNetGenerator: down1 (no norm) -> down2 -> down3.
    d1 = jax.block_until_ready(down(x, w1, normalize=False))
    d2 = jax.block_until_ready(down(d1, w2, normalize=True))
    d3 = jax.block_until_ready(down(d2, w3, normalize=True))

    assert d1.shape == (N, feats, H // 2, W // 2), d1.shape
    assert d2.shape == (N, 2 * feats, H // 4, W // 4), d2.shape
    assert d3.shape == (N, 4 * feats, H // 8, W // 8), d3.shape

    r1 = jax.block_until_ready(_reference(x, w1, normalize=False))
    r2 = jax.block_until_ready(_reference(d1, w2, normalize=True))
    r3 = jax.block_until_ready(_reference(d2, w3, normalize=True))

    def _f32(a):
        return np.asarray(a.astype(jnp.float32))

    # Kernel output is bf16 by design; compare with bf16-appropriate tolerance.
    np.testing.assert_allclose(_f32(d1), _f32(r1), rtol=2e-2, atol=2e-2)
    np.testing.assert_allclose(_f32(d2), _f32(r2), rtol=2e-2, atol=2e-2)
    np.testing.assert_allclose(_f32(d3), _f32(r3), rtol=2e-2, atol=2e-2)
    print("KERNEL_OK")
</pallas_src>

<mosaic_0001>
module attributes {stable_mosaic.version = 11 : i64} {
  func.func @_unet_down_kernel(%arg0: i32, %arg1: i32, %arg2: memref<1x16x256xbf16, #tpu.memory_space<vmem>>, %arg3: memref<8x64xbf16, #tpu.memory_space<vmem>>, %arg4: memref<1x128xf32, #tpu.memory_space<vmem>>, %arg5: memref<1x8x128xbf16, #tpu.memory_space<vmem>>, %arg6: memref<64x128xbf16, #tpu.memory_space<vmem>>) attributes {dimension_semantics = [#tpu.dimension_semantics<parallel>, #tpu.dimension_semantics<parallel>], iteration_bounds = array<i64: 2, 1>, scalar_prefetch = 0 : i64, scratch_operands = 1 : i64, tpu.core_type = #tpu.core_type<tc>, window_params = [{transform_indices = @transform_0, window_bounds = array<i64: 1, 16, 256>}, {transform_indices = @transform_1, window_bounds = array<i64: 8, 64>}, {pipeline_mode = #tpu.pipeline_mode<synchronous>, transform_indices = @transform_2, window_bounds = array<i64: 1, 128>}, {transform_indices = @transform_3, window_bounds = array<i64: 1, 8, 128>}]} {
    %c0 = arith.constant 0 : index
    %c0_0 = arith.constant 0 : index
    %c0_1 = arith.constant 0 : index
    %0 = vector.load %arg2[%c0, %c0_0, %c0_1] : memref<1x16x256xbf16, #tpu.memory_space<vmem>>, vector<1x16x128xbf16>
    %1 = vector.shape_cast %0 : vector<1x16x128xbf16> to vector<16x128xbf16>
    %c0_2 = arith.constant 0 : index
    %c0_3 = arith.constant 0 : index
    %2 = vector.load %arg6[%c0_2, %c0_3] : memref<64x128xbf16, #tpu.memory_space<vmem>>, vector<16x128xbf16>
    tpu.vector_store %arg6[%c0_2, %c0_3], %1 {strides = array<i32>} : memref<64x128xbf16, #tpu.memory_space<vmem>>, vector<16x128xbf16>,
    %c0_4 = arith.constant 0 : index
    %c0_5 = arith.constant 0 : index
    %c1 = arith.constant 1 : index
    %3 = vector.load %arg2[%c0_4, %c0_5, %c1] : memref<1x16x256xbf16, #tpu.memory_space<vmem>>, vector<1x16x128xbf16>
    %4 = vector.shape_cast %3 : vector<1x16x128xbf16> to vector<16x128xbf16>
    %c16 = arith.constant 16 : index
    %c0_6 = arith.constant 0 : index
    %5 = vector.load %arg6[%c16, %c0_6] : memref<64x128xbf16, #tpu.memory_space<vmem>>, vector<16x128xbf16>
    tpu.vector_store %arg6[%c16, %c0_6], %4 {strides = array<i32>} : memref<64x128xbf16, #tpu.memory_space<vmem>>, vector<16x128xbf16>,
    %c0_7 = arith.constant 0 : index
    %c0_8 = arith.constant 0 : index
    %c9 = arith.constant 9 : index
    %6 = vector.load %arg2[%c0_7, %c0_8, %c9] : memref<1x16x256xbf16, #tpu.memory_space<vmem>>, vector<1x16x128xbf16>
    %7 = vector.shape_cast %6 : vector<1x16x128xbf16> to vector<16x128xbf16>
    %c32 = arith.constant 32 : index
    %c0_9 = arith.constant 0 : index
    %8 = vector.load %arg6[%c32, %c0_9] : memref<64x128xbf16, #tpu.memory_space<vmem>>, vector<16x128xbf16>
    tpu.vector_store %arg6[%c32, %c0_9], %7 {strides = array<i32>} : memref<64x128xbf16, #tpu.memory_space<vmem>>, vector<16x128xbf16>,
    %c0_10 = arith.constant 0 : index
    %c0_11 = arith.constant 0 : index
    %c10 = arith.constant 10 : index
    %9 = vector.load %arg2[%c0_10, %c0_11, %c10] : memref<1x16x256xbf16, #tpu.memory_space<vmem>>, vector<1x16x128xbf16>
    %10 = vector.shape_cast %9 : vector<1x16x128xbf16> to vector<16x128xbf16>
    %c48 = arith.constant 48 : index
    %c0_12 = arith.constant 0 : index
    %11 = vector.load %arg6[%c48, %c0_12] : memref<64x128xbf16, #tpu.memory_space<vmem>>, vector<16x128xbf16>
    tpu.vector_store %arg6[%c48, %c0_12], %10 {strides = array<i32>} : memref<64x128xbf16, #tpu.memory_space<vmem>>, vector<16x128xbf16>,
    %c0_13 = arith.constant 0 : index
    %c0_14 = arith.constant 0 : index
    %12 = vector.load %arg3[%c0_13, %c0_14] : memref<8x64xbf16, #tpu.memory_space<vmem>>, vector<8x64xbf16>
    %c0_15 = arith.constant 0 : index
    %c0_16 = arith.constant 0 : index
    %13 = vector.load %arg6[%c0_15, %c0_16] : memref<64x128xbf16, #tpu.memory_space<vmem>>, vector<64x128xbf16>
    %cst = arith.constant dense<0.000000e+00> : vector<8x128xf32>
    %14 = tpu.matmul %12, %13, %cst {dimension_numbers = #tpu.dot_dimension_numbers<[1], [0], [0], [1], [0, 0, 1, 1], [], []>} : vector<8x64xbf16>, vector<64x128xbf16>, vector<8x128xf32> -> vector<8x128xf32>
    %cst_17 = arith.constant 2.000000e-01 : f32
    %15 = vector.broadcast %cst_17 : f32 to vector<8x128xf32>
    %16 = arith.mulf %15, %14 : vector<8x128xf32>
    %17 = arith.maximumf %14, %16 : vector<8x128xf32>
    %18 = arith.truncf %17 : vector<8x128xf32> to vector<8x128xbf16>
    %c0_18 = arith.constant 0 : index
    %c0_19 = arith.constant 0 : index
    %c0_20 = arith.constant 0 : index
    %19 = vector.load %arg5[%c0_18, %c0_19, %c0_20] : memref<1x8x128xbf16, #tpu.memory_space<vmem>>, vector<1x8x128xbf16>
    %20 = vector.shape_cast %19 : vector<1x8x128xbf16> to vector<8x128xbf16>
    %21 = vector.shape_cast %18 : vector<8x128xbf16> to vector<1x8x128xbf16>
    tpu.vector_store %arg5[%c0_18, %c0_19, %c0_20], %21 {strides = array<i32>} : memref<1x8x128xbf16, #tpu.memory_space<vmem>>, vector<1x8x128xbf16>,
    return
  }
  func.func @transform_0(%arg0: i32, %arg1: i32) -> (i32, i32, i32) {
    %c0_i32 = arith.constant 0 : i32
    %c0_i32_0 = arith.constant 0 : i32
    %c0_i32_1 = arith.constant 0 : i32
    return %arg0, %c0_i32, %c0_i32_0 : i32, i32, i32
  }
  func.func @transform_1(%arg0: i32, %arg1: i32) -> (i32, i32) {
    %c0_i32 = arith.constant 0 : i32
    %c0_i32_0 = arith.constant 0 : i32
    return %arg1, %c0_i32 : i32, i32
  }
  func.func @transform_2(%arg0: i32, %arg1: i32) -> (i32, i32) {
    %c0_i32 = arith.constant 0 : i32
    %c0_i32_0 = arith.constant 0 : i32
    %c0_i32_1 = arith.constant 0 : i32
    return %c0_i32, %c0_i32_0 : i32, i32
  }
  func.func @transform_3(%arg0: i32, %arg1: i32) -> (i32, i32, i32) {
    %c0_i32 = arith.constant 0 : i32
    %c0_i32_0 = arith.constant 0 : i32
    return %arg0, %arg1, %c0_i32 : i32, i32, i32
  }
}

</mosaic_0001>

<llo_original>
// kernel: unet_down.1
$region0: #{unet_down.1}
  #allocation0 [shape = 'u32[]', space=smem, size = 0x4, offset = 0x4, fixed_abs, tag = 'smem constant byte address 0x4 - core index']
  #allocation1 [shape = 'u32[72,128]{1,0:T(1,128)}', space=vmem, size = 0x9000, scoped, tag = 'internal scratch']
  #allocation2 [shape = 'bf16[64,128]{1,0:T(8,128)(2,1)}', space=vmem, size = 0x4000, scoped, tag = 'scratch operand']
  %s0 = inlined_call_operand.vmem [shape: bf16[2,16,256], index: 0, kind: input, shape index: {}]
  %s1 = inlined_call_operand.vmem [shape: bf16[8,64], index: 1, kind: input, shape index: {}]
  %s2 = inlined_call_operand.vmem [shape: f32[1,128], index: 2, kind: input, shape index: {}]
  %s3 = inlined_call_operand.vmem [shape: bf16[2,8,128], index: 3, kind: output, shape index: {}]
  %s4 = sld [smem:[#allocation0]]
  $region45: #{unet_down.1} parent=0
    _
  %s6 = ssub.s32 1, %s4
  %s7 = scalar_select 0, %s6, %s4
  loop: start=0, step=1, limit=4
  $region2: #{unet_down.1} parent=0 // loop_pre_header
    _
  $region3: #{unet_down.1} parent=0 // loop_header
    %s9 = sphi 0, %s13
    %p10 = scmp.ge.s32.totalorder %s9, 4
    %s16 = sphi 0, %s28
    %s17 = sphi 0, %s24
    %s18 = sphi 0, %s16
    %s19 = sphi 0, %s17
    %s20 = sphi 0, %s18
    %s21 = sphi 0, %s19
    %s31 = sphi 0, %s33
    %s34 = sphi 0, %s31
    %s35 = sphi 0, %s34
    %s51 = sphi 0, %s35
    %s57 = sphi 0, %s59
    %s60 = sphi 0, %s57
    %s61 = sphi 0, %s60
    %s77 = sphi 0, %s61
    %s81 = sphi 0, %s81
    %s83 = sphi 0, %s81
    %s84 = sphi 0, %s83
    %s98 = sphi 0, %s84
    %s106 = sphi 0, %s108
    %s109 = sphi 0, %s106
    %s110 = sphi 0, %s109
    %s126 = sphi 0, %s110
  $region4: #{unet_down.1} parent=0 // loop_header_branch
    %12 = sbr.rel (%p10) target = $region8
  $region5: #{unet_down.1} parent=0 // loop_body
    %s14 = ssub.s32 %s9, 1
    %s15 = ssub.s32 %s9, 2
    %s22 = sadd.s32 1, %s17
    %p23 = scmp.ge.s32.totalorder %s22, 1
    %s24 = scalar_select %p23, 0, %s22
    %s25 = sadd.s32 1, %s16
    %s26 = scalar_select %p23, %s25, %s16
    %p27 = scmp.ge.s32.totalorder %s26, 2
    %s28 = scalar_select %p27, 0, %s26
    %s29 = ssub.s32 %s16, %s28
    %p30 = scmp.eq.s32.totalorder %s29, 0
    %s32 = sadd.s32 %s31, 1
    %s33 = scalar_select %p30, %s31, %s32
    %p36 = pneg %p30
    %p37 = scmp.eq.s32.totalorder %s9, 1
    %p38 = por %p36, %p37
    %p39 = scmp.ne.s32.totalorder %s31, %s34
    %p40 = scmp.eq.s32.totalorder %s9, 0
    %p41 = por %p39, %p40
    %p42 = scmp.ne.s32.totalorder %s31, %s34
    %p43 = scmp.eq.s32.totalorder %s14, 1
    %p44 = por %p42, %p43
    %p45 = scmp.ne.s32.totalorder %s34, %s35
    %p46 = scmp.eq.s32.totalorder %s14, 0
    %p47 = por %p45, %p46
    %p48 = scmp.ne.s32.totalorder %s34, %s35
    %p49 = scmp.eq.s32.totalorder %s15, 1
    %p50 = por %p48, %p49
    %p52 = scmp.ne.s32.totalorder %s35, %s51
    %p53 = scmp.eq.s32.totalorder %s15, 0
    %p54 = por %p52, %p53
    %s55 = ssub.s32 %s17, %s24
    %p56 = scmp.eq.s32.totalorder %s55, 0
    %s58 = sadd.s32 %s57, 1
    %s59 = scalar_select %p56, %s57, %s58
    %p62 = pneg %p56
    %p63 = scmp.eq.s32.totalorder %s9, 1
    %p64 = por %p62, %p63
    %p65 = scmp.ne.s32.totalorder %s57, %s60
    %p66 = scmp.eq.s32.totalorder %s9, 0
    %p67 = por %p65, %p66
    %p68 = scmp.ne.s32.totalorder %s57, %s60
    %p69 = scmp.eq.s32.totalorder %s14, 1
    %p70 = por %p68, %p69
    %p71 = scmp.ne.s32.totalorder %s60, %s61
    %p72 = scmp.eq.s32.totalorder %s14, 0
    %p73 = por %p71, %p72
    %p74 = scmp.ne.s32.totalorder %s60, %s61
    %p75 = scmp.eq.s32.totalorder %s15, 1
    %p76 = por %p74, %p75
    %p78 = scmp.ne.s32.totalorder %s61, %s77
    %p79 = scmp.eq.s32.totalorder %s15, 0
    %p80 = por %p78, %p79
    %s82 = sadd.s32 %s81, 1
    %p85 = scmp.eq.s32.totalorder %s9, 1
    %p86 = scmp.ne.s32.totalorder %s81, %s83
    %p87 = scmp.eq.s32.totalorder %s9, 0
    %p88 = por %p86, %p87
    %p89 = scmp.ne.s32.totalorder %s81, %s83
    %p90 = scmp.eq.s32.totalorder %s14, 1
    %p91 = por %p89, %p90
    %p92 = scmp.ne.s32.totalorder %s83, %s84
    %p93 = scmp.eq.s32.totalorder %s14, 0
    %p94 = por %p92, %p93
    %p95 = scmp.ne.s32.totalorder %s83, %s84
    %p96 = scmp.eq.s32.totalorder %s15, 1
    %p97 = por %p95, %p96
    %p99 = scmp.ne.s32.totalorder %s84, %s98
    %p100 = scmp.eq.s32.totalorder %s15, 0
    %p101 = por %p99, %p100
    %s102 = ssub.s32 %s16, %s28
    %s103 = ssub.s32 %s17, %s24
    %s104 = sor.u32 %s102, %s103
    %p105 = scmp.eq.s32.totalorder %s104, 0
    %s107 = sadd.s32 %s106, 1
    %s108 = scalar_select %p105, %s106, %s107
    %p111 = pneg %p105
    %p112 = scmp.eq.s32.totalorder %s9, 1
    %p113 = por %p111, %p112
    %p114 = scmp.ne.s32.totalorder %s106, %s109
    %p115 = scmp.eq.s32.totalorder %s9, 0
    %p116 = por %p114, %p115
    %p117 = scmp.ne.s32.totalorder %s106, %s109
    %p118 = scmp.eq.s32.totalorder %s14, 1
    %p119 = por %p117, %p118
    %p120 = scmp.ne.s32.totalorder %s109, %s110
    %p121 = scmp.eq.s32.totalorder %s14, 0
    %p122 = por %p120, %p121
    %p123 = scmp.ne.s32.totalorder %s109, %s110
    %p124 = scmp.eq.s32.totalorder %s15, 1
    %p125 = por %p123, %p124
    %p127 = scmp.ne.s32.totalorder %s110, %s126
    %p128 = scmp.eq.s32.totalorder %s15, 0
    %p129 = por %p127, %p128
    %p130 = scmp.le.s32.totalorder 1, %s9
    %p131 = scmp.lt.s32.totalorder %s9, 3
    %p132 = pnand %p130, %p131
    %p133 = pneg %p132
    // Predicated region
    $region9: #{unet_down.1} parent=5 // pred_check
      _
    $region10: #{unet_down.1} parent=5 // pred_check_branch
      %135 = sbr.rel (%p132) target = $region12
    $region11: #{unet_down.1} parent=5 // pred_region
      %s136 = ssub.s32 %s9, 1
      // Predicated region
      $region13: #{unet_down.1} parent=11 // pred_check
        %p137 = pneg %p73
      $region14: #{unet_down.1} parent=11 // pred_check_branch
        %139 = sbr.rel (%p137) target = $region16
      $region15: #{unet_down.1} parent=11 // pred_region
        %p140 = scmp.lt.s32.totalorder %s19, 0
        %s141 = scalar_select %p140, %s19, 0
        %s142 = smul.addr %s141, 4
        %s143 = scalar_lea.vmem %s1, %s142
      $region16: #{unet_down.1} parent=11 // pred_fallthru
        _
      // Predicated region
      $region17: #{unet_down.1} parent=11 // pred_check
        %p144 = pneg %p94
      $region18: #{unet_down.1} parent=11 // pred_check_branch
        %146 = sbr.rel (%p144) target = $region20
      $region19: #{unet_down.1} parent=11 // pred_region
        _
      $region20: #{unet_down.1} parent=11 // pred_fallthru
        _
    $region12: #{unet_down.1} parent=5 // pred_fallthru
      _
    %p147 = scmp.lt.s32.totalorder %s9, 2
    // Predicated region
    $region21: #{unet_down.1} parent=5 // pred_check
      %p148 = pneg %p147
    $region22: #{unet_down.1} parent=5 // pred_check_branch
      %150 = sbr.rel (%p148) target = $region24
    $region23: #{unet_down.1} parent=5 // pred_region
      // Predicated region
      $region25: #{unet_down.1} parent=23 // pred_check
        %p151 = pneg %p41
      $region26: #{unet_down.1} parent=23 // pred_check_branch
        %153 = sbr.rel (%p151) target = $region28
      $region27: #{unet_down.1} parent=23 // pred_region
        %p154 = scmp.lt.s32.totalorder %s16, 1
        %s155 = scalar_select %p154, %s16, 1
        %s156 = smul.addr %s155, 4
        %s157 = smul.addr %s156, 4
        %s158 = scalar_lea.vmem %s0, %s157
      $region28: #{unet_down.1} parent=23 // pred_fallthru
        _
    $region24: #{unet_down.1} parent=5 // pred_fallthru
      _
    %p159 = scmp.le.s32.totalorder 1, %s9
    %p160 = scmp.lt.s32.totalorder %s9, 3
    %p161 = pnand %p159, %p160
    %p162 = pneg %p161
    // Predicated region
    $region29: #{unet_down.1} parent=5 // pred_check
      _
    $region30: #{unet_down.1} parent=5 // pred_check_branch
      %164 = sbr.rel (%p161) target = $region32
    $region31: #{unet_down.1} parent=5 // pred_region
      %s165 = ssub.s32 %s9, 1
      %p166 = scmp.lt.s32.totalorder %s18, 1
      %s167 = scalar_select %p166, %s18, 1
      %s168 = smul.addr %s167, 4
      %s169 = smul.addr %s168, 4
      %s170 = scalar_lea.vmem %s0, %s169
      %p171 = pneg %p47
      %p172 = pneg %p44
      %p173 = scmp.lt.s32.totalorder %s19, 0
      %s174 = scalar_select %p173, %s19, 0
      %s175 = smul.addr %s174, 4
      %s176 = scalar_lea.vmem %s1, %s175
      %p177 = pneg %p73
      %p178 = pneg %p70
      %p179 = pneg %p94
      %p180 = pneg %p91
      %p181 = pneg %p122
      %p182 = pneg %p119
      %p183 = scmp.lt.s32.totalorder %s18, 1
      %s184 = scalar_select %p183, %s18, 1
      %p185 = scmp.lt.s32.totalorder %s19, 0
      %s186 = scalar_select %p185, %s19, 0
      %s187 = sadd.s32 %s186, %s184
      %s188 = smul.addr %s187, 4
      %s189 = scalar_lea.vmem %s3, %s188
      %p190 = scmp.lt.s32.totalorder %s18, 1
      %s191 = scalar_select %p190, %s18, 1
      %s192 = smul.addr %s191, 4
      %s193 = smul.addr %s192, 4
      %s194 = scalar_lea.vmem %s0, %s193
      %p195 = scmp.lt.s32.totalorder %s19, 0
      %s196 = scalar_select %p195, %s19, 0
      %s197 = smul.addr %s196, 4
      %s198 = scalar_lea.vmem %s1, %s197
      %p199 = scmp.lt.s32.totalorder %s18, 1
      %s200 = scalar_select %p199, %s18, 1
      %p201 = scmp.lt.s32.totalorder %s19, 0
      %s202 = scalar_select %p201, %s19, 0
      %s203 = sadd.s32 %s202, %s200
      %s204 = smul.addr %s203, 4
      %s205 = scalar_lea.vmem %s3, %s204
      %v207 = vld [vmem:[%s194] sm:$0xf]
      %v208 = vld [vmem:[%s194 + $0x8] sm:$0xf]
      %209 = vst [vmem:[#allocation2] sm:$0xf] %v207
      %210 = vst [vmem:[#allocation2 + $0x4] sm:$0xf] %v208
      %v211 = vld [vmem:[%s194] sm:$0xff]
      %v212 = vld [vmem:[%s194 + $0x8] sm:$0xff]
      %215 = vrot.lane.b32.xlu0 %v211, 127
      %v216 = vpop.permute.xlu0 %215
      %217 = vrot.lane.b32.xlu0 %v212, 127
      %v218 = vpop.permute.xlu0 %217
      %v219 = vrot.slane %v216, 4
      %v220 = vrot.slane %v218, 4
      %vm221 = vcmask 1039360
      %v222 = vsel %vm221, %v216, %v219
      %v223 = vsel %vm221, %v218, %v220
      %226 = vst [vmem:[#allocation2 + $0x8] sm:$0xf] %v222
      %227 = vst [vmem:[#allocation2 + $0xc] sm:$0xf] %v223
      %v228 = vld [vmem:[%s194] sm:$0xff]
      %v229 = vld [vmem:[%s194 + $0x8] sm:$0xff]
      %232 = vrot.lane.b32.xlu0 %v228, 119
      %v233 = vpop.permute.xlu0 %232
      %234 = vrot.lane.b32.xlu0 %v229, 119
      %v235 = vpop.permute.xlu0 %234
      %v236 = vrot.slane %v233, 4
      %v237 = vrot.slane %v235, 4
      %vm238 = vcmask 973824
      %v239 = vsel %vm238, %v233, %v236
      %v240 = vsel %vm238, %v235, %v237
      %243 = vst [vmem:[#allocation2 + $0x10] sm:$0xf] %v239
      %244 = vst [vmem:[#allocation2 + $0x14] sm:$0xf] %v240
      %v245 = vld [vmem:[%s194] sm:$0xff]
      %v246 = vld [vmem:[%s194 + $0x8] sm:$0xff]
      %249 = vrot.lane.b32.xlu0 %v245, 118
      %v250 = vpop.permute.xlu0 %249
      %251 = vrot.lane.b32.xlu0 %v246, 118
      %v252 = vpop.permute.xlu0 %251
      %v253 = vrot.slane %v250, 4
      %v254 = vrot.slane %v252, 4
      %vm255 = vcmask 965632
      %v256 = vsel %vm255, %v250, %v253
      %v257 = vsel %vm255, %v252, %v254
      %260 = vst [vmem:[#allocation2 + $0x18] sm:$0xf] %v256
      %261 = vst [vmem:[#allocation2 + $0x1c] sm:$0xf] %v257
      %v262 = vld [vmem:[%s198] sm:$0xf]
      %v263 = vld [vmem:[#allocation2] sm:$0xf]
      %v264 = vld [vmem:[#allocation2 + $0x4] sm:$0xf]
      %v265 = vld [vmem:[#allocation2 + $0x8] sm:$0xf]
      %v266 = vld [vmem:[#allocation2 + $0xc] sm:$0xf]
      %v267 = vld [vmem:[#allocation2 + $0x10] sm:$0xf]
      %v268 = vld [vmem:[#allocation2 + $0x14] sm:$0xf]
      %v269 = vld [vmem:[#allocation2 + $0x18] sm:$0xf]
      %v270 = vld [vmem:[#allocation2 + $0x1c] sm:$0xf]
      %v279 = vunpack.c.l.b16 %v263
      %v280 = vunpack.c.l.b16 %v264
      %v281 = vunpack.c.l.b16 %v265
      %v282 = vunpack.c.l.b16 %v266
      %v283 = vunpack.c.l.b16 %v267
      %v284 = vunpack.c.l.b16 %v268
      %v285 = vunpack.c.l.b16 %v269
      %v286 = vunpack.c.l.b16 %v270
      %v287 = vpack.c.b16 %v280, %v279
      %v288 = vpack.c.b16 %v282, %v281
      %v289 = vpack.c.b16 %v284, %v283
      %v290 = vpack.c.b16 %v286, %v285
      %vm295 = vcmask 523264
      %v297 = vsel %vm295, %v262, 0
      %299 = vmatpush.bf16.msra.mxu0 0
      %300 = vmatpush.bf16.msra.mxu0 0
      %301 = vmatpush.bf16.msra.mxu0 0
      %302 = vmatpush.bf16.msra.mxu0 0
      %303 = vmatpush.bf16.msra.mxu0 %v290
      %304 = vmatpush.bf16.msra.mxu0 %v289
      %305 = vmatpush.bf16.msra.mxu0 %v288
      %306 = vmatpush.bf16.msra.mxu0 %v287
      %307 = vmatmul.bf16.gmra.mxu0 %v297
      %v308 = vpop.f32.mrf.mxu0
      %v309 = vadd.f32 0.0, %v308
      %v310 = vpop.f32.mrf.mxu0
      %311 = vdwg.mxu0
      %v312 = vmul.f32 %v309, 0.2
      %v313 = vmax.f32 %v309, %v312
      %v314 = vpack.c.bf16 %v313, %v313
      %315 = vst [vmem:[%s205] sm:$0xf] %v314
      %p316 = scmp.lt.s32.totalorder %s18, 1
      %s317 = scalar_select %p316, %s18, 1
      %p318 = scmp.lt.s32.totalorder %s19, 0
      %s319 = scalar_select %p318, %s19, 0
      %s320 = sadd.s32 %s319, %s317
      %s321 = smul.addr %s320, 4
      %s322 = scalar_lea.vmem %s3, %s321
      // Predicated region
      $region33: #{unet_down.1} parent=31 // pred_check
        %p323 = pneg %p119
      $region34: #{unet_down.1} parent=31 // pred_check_branch
        %325 = sbr.rel (%p323) target = $region36
      $region35: #{unet_down.1} parent=31 // pred_region
        _
      $region36: #{unet_down.1} parent=31 // pred_fallthru
        _
    $region32: #{unet_down.1} parent=5 // pred_fallthru
      _
    %p326 = scmp.le.s32.totalorder 2, %s9
    // Predicated region
    $region37: #{unet_down.1} parent=5 // pred_check
      %p327 = pneg %p326
    $region38: #{unet_down.1} parent=5 // pred_check_branch
      %329 = sbr.rel (%p327) target = $region40
    $region39: #{unet_down.1} parent=5 // pred_region
      %s330 = ssub.s32 %s9, 2
      // Predicated region
      $region41: #{unet_down.1} parent=39 // pred_check
        %p331 = pneg %p125
      $region42: #{unet_down.1} parent=39 // pred_check_branch
        %333 = sbr.rel (%p331) target = $region44
      $region43: #{unet_down.1} parent=39 // pred_region
        %p334 = scmp.lt.s32.totalorder %s20, 1
        %s335 = scalar_select %p334, %s20, 1
        %p336 = scmp.lt.s32.totalorder %s21, 0
        %s337 = scalar_select %p336, %s21, 0
        %s338 = sadd.s32 %s337, %s335
        %s339 = smul.addr %s338, 4
        %s340 = scalar_lea.vmem %s3, %s339
      $region44: #{unet_down.1} parent=39 // pred_fallthru
        _
    $region40: #{unet_down.1} parent=5 // pred_fallthru
      _
  $region6: #{unet_down.1} parent=0 // loop_footer
    %s13 = sadd.s32 1, %s9
  $region7: #{unet_down.1} parent=0 // loop_footer_branch
    %8 = sbr.rel target = $region3
  $region8: #{unet_down.1} parent=0 // loop_exit
    _

</llo_original>
